<compile_context>
chip_gen: v5e
topology: v5e:2x2
jax: 0.10.0
libtpu: 0.0.40
codegen_flags: <defaults>
</compile_context>

<pallas_src>
import math

import jax
import jax.numpy as jnp
from jax.experimental import pallas as pl
from jax.experimental.pallas import tpu as pltpu


def _round_up(x, m):
    return ((x + m - 1) // m) * m


def _pick_tile(dim, candidates, align):
    """Pick a tile from `candidates` (clamped to the padded extent of `dim`).

    Prefers the largest tile whose padded extent stays within ~12.5% of the
    minimum achievable padding, so awkward sizes get a full-extent tile instead
    of nearly doubling the work, while large dims still get big (512-class)
    tiles for operand reuse.
    """
    dim = int(dim)
    dim_a = _round_up(max(dim, 1), align)
    opts = []
    for c in candidates:
        t = min(_round_up(int(c), align), dim_a)
        opts.append((t, _round_up(dim, t)))
    best_padded = min(p for _, p in opts)
    limit = max(best_padded + align, int(best_padded * 1.125))
    return max(t for t, p in opts if p <= limit)


def _vmem_limit_bytes(usage_bytes):
    """Actual double-buffered usage + headroom, capped at 3/4 of physical VMEM."""
    phys = 64 * 1024 * 1024  # conservative default (v7x per-TC VMEM)
    try:
        info = pltpu.get_tpu_info()
        phys = int(getattr(info, "vmem_capacity_bytes", phys))
    except Exception:
        pass
    headroom = 16 * 1024 * 1024
    return int(min(max(usage_bytes + headroom, 32 * 1024 * 1024), (phys * 3) // 4))


def _linear_kernel(x_ref, w_ref, b_ref, o_ref):
    # x_ref: (tm, tk)  w_ref: (tk, tn)  b_ref: (1, tn) f32  o_ref: (tm, tn) f32.
    # The output block index is constant along k, so o_ref itself is the
    # resident f32 accumulator -- no separate scratch / finalize copy needed.
    k = pl.program_id(2)

    @pl.when(k == 0)
    def _init():
        o_ref[...] = jnp.zeros_like(o_ref)

    o_ref[...] += jnp.dot(
        x_ref[...], w_ref[...], preferred_element_type=jnp.float32
    )

    @pl.when(k == pl.num_programs(2) - 1)
    def _finalize():
        o_ref[...] += b_ref[...]


class PallasLinear:
    """Pallas TPU equivalent of nn.Linear's forward: y = x @ W + b.

    The weight is stored pre-transposed as [in_features, out_features], so the
    kernel computes x @ W (== PyTorch x @ W_pt.T). Weight/bias padding (and the
    optional bf16 cast) happen once here, outside the per-call hot path.
    """

    _TN_CANDIDATES = (512, 256, 128)
    _TK_CANDIDATES = (2048, 1024, 512, 256, 128)
    _TM_CANDIDATES = (512, 256, 128, 64, 32, 16, 8)

    def __init__(self, w, b=None, *, compute_dtype=None, tn=None, tk=None):
        K, N = w.shape
        self.in_features, self.out_features = int(K), int(N)
        self.compute_dtype = compute_dtype
        self._in_dtype = (
            jnp.dtype(compute_dtype) if compute_dtype is not None else jnp.dtype(w.dtype)
        )
        # bf16 operands need (16, 128) min tiles; f32 needs (8, 128).
        self.sub_align = 16 if self._in_dtype.itemsize < 4 else 8

        self.tn = int(tn) if tn is not None else _pick_tile(N, self._TN_CANDIDATES, 128)
        self.tk = int(tk) if tk is not None else _pick_tile(K, self._TK_CANDIDATES, 128)
        Kp, Np = _round_up(K, self.tk), _round_up(N, self.tn)
        self.Kp, self.Np = Kp, Np

        # Pad + cast the weight ONCE (padded K rows contribute 0 to the matmul,
        # padded N cols are sliced off at the end).
        w_p = w if (Kp, Np) == (K, N) else jnp.pad(w, ((0, Kp - K), (0, Np - N)))
        if compute_dtype is not None:
            w_p = w_p.astype(compute_dtype)
        self.w_p = w_p

        if b is None:
            b = jnp.zeros((N,), jnp.float32)
        b_p = b if Np == N else jnp.pad(b, (0, Np - N))
        self.b_p = b_p.astype(jnp.float32).reshape(1, Np)

    def __call__(self, x):
        K, N = self.in_features, self.out_features
        assert x.shape[-1] == K, f"expected last dim {K}, got {x.shape}"
        lead = x.shape[:-1]
        x2 = x.reshape(-1, K)
        M = x2.shape[0]

        tm = _pick_tile(M, self._TM_CANDIDATES, self.sub_align)
        tn, tk = self.tn, self.tk
        Mp, Kp, Np = _round_up(M, tm), self.Kp, self.Np

        if self.compute_dtype is not None:
            x2 = x2.astype(self.compute_dtype)
        if (Mp, Kp) != (M, K):
            x2 = jnp.pad(x2, ((0, Mp - M), (0, Kp - K)))

        grid = (Mp // tm, Np // tn, Kp // tk)

        in_bytes = self._in_dtype.itemsize
        # Double-buffered x / W / bias tiles + double-buffered f32 output block.
        usage = 2 * (tm * tk * in_bytes + tk * tn * in_bytes + tn * 4) + 2 * tm * tn * 4
        vmem_limit = _vmem_limit_bytes(usage)

        cost = pl.CostEstimate(
            flops=2 * M * N * K,
            transcendentals=0,
            bytes_accessed=in_bytes * (M * K + K * N) + 4 * (M * N + N),
        )

        out = pl.pallas_call(
            _linear_kernel,
            out_shape=jax.ShapeDtypeStruct((Mp, Np), jnp.float32),
            grid_spec=pltpu.PrefetchScalarGridSpec(
                num_scalar_prefetch=0,
                grid=grid,
                in_specs=[
                    pl.BlockSpec((tm, tk), lambda i, j, k: (i, k)),   # x tile
                    pl.BlockSpec((tk, tn), lambda i, j, k: (k, j)),   # W tile
                    pl.BlockSpec((1, tn), lambda i, j, k: (0, j)),    # bias tile
                ],
                out_specs=pl.BlockSpec((tm, tn), lambda i, j, k: (i, j)),
            ),
            compiler_params=pltpu.CompilerParams(
                dimension_semantics=("parallel", "parallel", "arbitrary"),
                vmem_limit_bytes=vmem_limit,
            ),
            cost_estimate=cost,
        )(x2, self.w_p, self.b_p)

        return out[:M, :N].reshape(lead + (N,))


def init_linear_params(key, in_features, out_features, bias=True):
    """Deterministic init matching nn.Linear defaults (kaiming_uniform a=sqrt(5))."""
    kw, kb = jax.random.split(key)
    bound = 1.0 / math.sqrt(in_features)
    # PyTorch weight is [out, in]; we store transposed [in, out] for the kernel.
    w = jax.random.uniform(
        kw, (in_features, out_features), jnp.float32, minval=-bound, maxval=bound
    )
    if bias:
        b = jax.random.uniform(
            kb, (out_features,), jnp.float32, minval=-bound, maxval=bound
        )
    else:
        b = None
    return w, b


if __name__ == "__main__":
    key = jax.random.PRNGKey(0)
    k_x, k_p, k_x2, k_p2, k_x3, k_p3 = jax.random.split(key, 6)

    # Main case: leading batch dims, tile-aligned features.
    in_features, out_features = 128, 256
    x = jax.random.normal(k_x, (2, 8, in_features), jnp.float32)
    w, b = init_linear_params(k_p, in_features, out_features, bias=True)
    layer = PallasLinear(w, b)
    y = jax.block_until_ready(layer(x))
    y_ref = x @ w + b[None, None, :]
    assert y.shape == y_ref.shape
    assert jnp.allclose(y, y_ref, atol=1e-4, rtol=1e-4), "mismatch vs reference"

    # Ragged (non-tile-aligned) case exercises the padding path.
    x2 = jax.random.normal(k_x2, (5, 70), jnp.float32)
    w2, b2 = init_linear_params(k_p2, 70, 33, bias=True)
    y2 = jax.block_until_ready(PallasLinear(w2, b2)(x2))
    y2_ref = x2 @ w2 + b2[None, :]
    assert jnp.allclose(y2, y2_ref, atol=1e-4, rtol=1e-4), "ragged mismatch"

    # Multi-step K reduction (tk override) exercises the k-accumulation path.
    x3 = jax.random.normal(k_x3, (16, 256), jnp.float32)
    w3, b3 = init_linear_params(k_p3, 256, 128, bias=True)
    y3 = jax.block_until_ready(PallasLinear(w3, b3, tk=128)(x3))
    y3_ref = x3 @ w3 + b3[None, :]
    assert jnp.allclose(y3, y3_ref, atol=1e-4, rtol=1e-4), "k-reduction mismatch"

    # Optional bf16-MXU path (f32 accumulate + f32 bias/output), looser tolerance.
    yb = jax.block_until_ready(PallasLinear(w, b, compute_dtype=jnp.bfloat16)(x))
    assert jnp.allclose(yb, y_ref, atol=5e-2, rtol=5e-2), "bf16 mismatch"

    print("KERNEL_OK")
</pallas_src>

<mosaic_0001>
module attributes {stable_mosaic.version = 11 : i64} {
  func.func @_linear_kernel(%arg0: i32, %arg1: i32, %arg2: i32, %arg3: memref<16x128xf32, #tpu.memory_space<vmem>>, %arg4: memref<128x256xf32, #tpu.memory_space<vmem>>, %arg5: memref<1x256xf32, #tpu.memory_space<vmem>>, %arg6: memref<16x256xf32, #tpu.memory_space<vmem>>) attributes {dimension_semantics = [#tpu.dimension_semantics<parallel>, #tpu.dimension_semantics<parallel>, #tpu.dimension_semantics<arbitrary>], iteration_bounds = array<i64: 1, 1, 1>, scalar_prefetch = 0 : i64, scratch_operands = 0 : i64, tpu.core_type = #tpu.core_type<tc>, window_params = [{transform_indices = @transform_0, window_bounds = array<i64: 16, 128>}, {transform_indices = @transform_1, window_bounds = array<i64: 128, 256>}, {transform_indices = @transform_2, window_bounds = array<i64: 1, 256>}, {transform_indices = @transform_3, window_bounds = array<i64: 16, 256>}]} {
    %c0_i32 = arith.constant 0 : i32
    %0 = arith.cmpi eq, %arg2, %c0_i32 : i32
    %1 = arith.extui %0 : i1 to i32
    %c0_i32_0 = arith.constant 0 : i32
    %2 = arith.cmpi ne, %1, %c0_i32_0 : i32
    scf.if %2 {
      %cst_10 = arith.constant 0.000000e+00 : f32
      %12 = vector.broadcast %cst_10 : f32 to vector<16x256xf32>
      %c0_11 = arith.constant 0 : index
      %c0_12 = arith.constant 0 : index
      %13 = vector.load %arg6[%c0_11, %c0_12] : memref<16x256xf32, #tpu.memory_space<vmem>>, vector<16x256xf32>
      tpu.vector_store %arg6[%c0_11, %c0_12], %12 {strides = array<i32>} : memref<16x256xf32, #tpu.memory_space<vmem>>, vector<16x256xf32>,
    } else {
    }
    %c0 = arith.constant 0 : index
    %c0_1 = arith.constant 0 : index
    %3 = vector.load %arg6[%c0, %c0_1] : memref<16x256xf32, #tpu.memory_space<vmem>>, vector<16x256xf32>
    %c0_2 = arith.constant 0 : index
    %c0_3 = arith.constant 0 : index
    %4 = vector.load %arg3[%c0_2, %c0_3] : memref<16x128xf32, #tpu.memory_space<vmem>>, vector<16x128xf32>
    %c0_4 = arith.constant 0 : index
    %c0_5 = arith.constant 0 : index
    %5 = vector.load %arg4[%c0_4, %c0_5] : memref<128x256xf32, #tpu.memory_space<vmem>>, vector<128x256xf32>
    %cst = arith.constant dense<0.000000e+00> : vector<16x256xf32>
    %6 = tpu.matmul %4, %5, %cst {dimension_numbers = #tpu.dot_dimension_numbers<[1], [0], [0], [1], [0, 0, 1, 1], [], []>} : vector<16x128xf32>, vector<128x256xf32>, vector<16x256xf32> -> vector<16x256xf32>
    %7 = arith.addf %3, %6 : vector<16x256xf32>
    %c0_6 = arith.constant 0 : index
    %c0_7 = arith.constant 0 : index
    %8 = vector.load %arg6[%c0_6, %c0_7] : memref<16x256xf32, #tpu.memory_space<vmem>>, vector<16x256xf32>
    tpu.vector_store %arg6[%c0_6, %c0_7], %7 {strides = array<i32>} : memref<16x256xf32, #tpu.memory_space<vmem>>, vector<16x256xf32>,
    %c0_i32_8 = arith.constant 0 : i32
    %9 = arith.cmpi eq, %arg2, %c0_i32_8 : i32
    %10 = arith.extui %9 : i1 to i32
    %c0_i32_9 = arith.constant 0 : i32
    %11 = arith.cmpi ne, %10, %c0_i32_9 : i32
    scf.if %11 {
      %c0_10 = arith.constant 0 : index
      %c0_11 = arith.constant 0 : index
      %12 = vector.load %arg6[%c0_10, %c0_11] : memref<16x256xf32, #tpu.memory_space<vmem>>, vector<16x256xf32>
      %c0_12 = arith.constant 0 : index
      %c0_13 = arith.constant 0 : index
      %13 = vector.load %arg5[%c0_12, %c0_13] : memref<1x256xf32, #tpu.memory_space<vmem>>, vector<1x256xf32>
      %14 = vector.broadcast %13 : vector<1x256xf32> to vector<16x256xf32>
      %15 = arith.addf %12, %14 : vector<16x256xf32>
      %c0_14 = arith.constant 0 : index
      %c0_15 = arith.constant 0 : index
      %16 = vector.load %arg6[%c0_14, %c0_15] : memref<16x256xf32, #tpu.memory_space<vmem>>, vector<16x256xf32>
      tpu.vector_store %arg6[%c0_14, %c0_15], %15 {strides = array<i32>} : memref<16x256xf32, #tpu.memory_space<vmem>>, vector<16x256xf32>,
    } else {
    }
    return
  }
  func.func @transform_0(%arg0: i32, %arg1: i32, %arg2: i32) -> (i32, i32) {
    %c0_i32 = arith.constant 0 : i32
    return %arg0, %arg2 : i32, i32
  }
  func.func @transform_1(%arg0: i32, %arg1: i32, %arg2: i32) -> (i32, i32) {
    %c0_i32 = arith.constant 0 : i32
    return %arg2, %arg1 : i32, i32
  }
  func.func @transform_2(%arg0: i32, %arg1: i32, %arg2: i32) -> (i32, i32) {
    %c0_i32 = arith.constant 0 : i32
    %c0_i32_0 = arith.constant 0 : i32
    return %c0_i32, %arg1 : i32, i32
  }
  func.func @transform_3(%arg0: i32, %arg1: i32, %arg2: i32) -> (i32, i32) {
    %c0_i32 = arith.constant 0 : i32
    return %arg0, %arg1 : i32, i32
  }
}

</mosaic_0001>

<llo_original>
// kernel: tpu_custom_call.1
$region0: #{tpu_custom_call.1}
  #allocation0 [shape = 'u32[]', space=smem, size = 0x4, offset = 0x4, fixed_abs, tag = 'smem constant byte address 0x4 - core index']
  #allocation1 [shape = 'u32[72,128]{1,0:T(1,128)}', space=vmem, size = 0x9000, scoped, tag = 'internal scratch']
  %s0 = inlined_call_operand.hbm [shape: f32[16,128], index: 0, kind: input, shape index: {}]
  %s1 = inlined_call_operand.hbm [shape: f32[128,256], index: 1, kind: input, shape index: {}]
  %s2 = inlined_call_operand.hbm [shape: f32[1,256], index: 2, kind: input, shape index: {}]
  %s3 = inlined_call_operand.hbm [shape: f32[16,256], index: 3, kind: output, shape index: {}]
  %s4 = sld [smem:[#allocation0]]
  $region42: #{tpu_custom_call.1} parent=0
    _
  %s6 = ssub.s32 1, %s4
  %s7 = scalar_select 0, %s6, %s4
  $region1: #{tpu_custom_call.1} parent=0
    #allocation2 [shape = 'u8[8192]{0}', space=vmem, size = 0x2000, scoped, tag = 'input window, operand 0, single buffered']
    #allocation3 [shape = 's32[1]{0}', space=sflag, size = 0x4, scoped, tag = 'scoped memory for tpu_custom_call.1']
    #allocation4 [shape = 's32[1]{0}', space=sflag, size = 0x4, scoped, tag = 'scoped memory for tpu_custom_call.1']
    #allocation5 [shape = 'u8[131072]{0}', space=vmem, size = 0x20000, scoped, tag = 'input window, operand 1, single buffered']
    #allocation6 [shape = 's32[1]{0}', space=sflag, size = 0x4, scoped, tag = 'scoped memory for tpu_custom_call.1']
    #allocation7 [shape = 'u8[1024]{0}', space=vmem, size = 0x400, scoped, tag = 'input window, operand 2, single buffered']
    #allocation8 [shape = 'u8[16384]{0}', space=vmem, size = 0x4000, scoped, tag = 'output window, operand 0, single buffered']
    %8 = vsyncpa [#allocation3], 0
    %9 = vsyncpa [#allocation6], 0
    %10 = vsyncpa [#allocation4], 0
    // Predicated region
    $region2: #{tpu_custom_call.1} parent=1 // pred_check
      _
    $region3: #{tpu_custom_call.1} parent=1 // pred_check_branch
      %12 = sbr.rel (0) target = $region5
    $region4: #{tpu_custom_call.1} parent=1 // pred_region
      %14 = vsyncadd [#allocation3], 0
      %s15 = sshll.u32 %s0, 4
      %s16 = int_to_ptr.hbm [resolvable:$true] %s15
      %s17 = sshll.u32 [#allocation2], 4
      %s18 = int_to_ptr.vmem [resolvable:$true] %s17
      %23 = dma.hbm_to_vmem [thread:$0]  %s16, 256, %s18, [#allocation3], 128, 128, 8
    $region5: #{tpu_custom_call.1} parent=1 // pred_fallthru
      _
    // Predicated region
    $region6: #{tpu_custom_call.1} parent=1 // pred_check
      _
    $region7: #{tpu_custom_call.1} parent=1 // pred_check_branch
      %25 = sbr.rel (0) target = $region9
    $region8: #{tpu_custom_call.1} parent=1 // pred_region
      %27 = vsyncadd [#allocation6], 0
      %s28 = sshll.u32 %s1, 4
      %s29 = int_to_ptr.hbm [resolvable:$true] %s28
      %s30 = sshll.u32 [#allocation5], 4
      %s31 = int_to_ptr.vmem [resolvable:$true] %s30
      %36 = dma.hbm_to_vmem [thread:$0]  %s29, 4096, %s31, [#allocation6], 256, 256, 16
    $region9: #{tpu_custom_call.1} parent=1 // pred_fallthru
      _
    // Predicated region
    $region10: #{tpu_custom_call.1} parent=1 // pred_check
      _
    $region11: #{tpu_custom_call.1} parent=1 // pred_check_branch
      %38 = sbr.rel (0) target = $region13
    $region12: #{tpu_custom_call.1} parent=1 // pred_region
      %40 = vsyncadd [#allocation6], 0
      %s42 = sshll.u32 %s2, 4
      %s43 = int_to_ptr.hbm [resolvable:$true] %s42
      %s44 = sshll.u32 [#allocation7], 4
      %s45 = int_to_ptr.vmem [resolvable:$true] %s44
      %47 = dma.hbm_to_vmem [thread:$0]  %s43, 32, %s45, [#allocation6]
    $region13: #{tpu_custom_call.1} parent=1 // pred_fallthru
      _
    // Predicated region
    $region14: #{tpu_custom_call.1} parent=1 // pred_check
      _
    $region15: #{tpu_custom_call.1} parent=1 // pred_check_branch
      %49 = sbr.rel (0) target = $region17
    $region16: #{tpu_custom_call.1} parent=1 // pred_region
      %51 = dma.done [#allocation3], 256
    $region17: #{tpu_custom_call.1} parent=1 // pred_fallthru
      _
    // Predicated region
    $region18: #{tpu_custom_call.1} parent=1 // pred_check
      _
    $region19: #{tpu_custom_call.1} parent=1 // pred_check_branch
      %53 = sbr.rel (0) target = $region21
    $region20: #{tpu_custom_call.1} parent=1 // pred_region
      %55 = dma.done [#allocation6], 4096
    $region21: #{tpu_custom_call.1} parent=1 // pred_fallthru
      _
    // Predicated region
    $region22: #{tpu_custom_call.1} parent=1 // pred_check
      _
    $region23: #{tpu_custom_call.1} parent=1 // pred_check_branch
      %57 = sbr.rel (0) target = $region25
    $region24: #{tpu_custom_call.1} parent=1 // pred_region
      %59 = dma.done [#allocation6], 32
    $region25: #{tpu_custom_call.1} parent=1 // pred_fallthru
      _
    %p60 = scmp.eq.s32.totalorder 0, 0
    // Predicated region
    $region26: #{tpu_custom_call.1} parent=1 // pred_check
      %p61 = pneg %p60
    $region27: #{tpu_custom_call.1} parent=1 // pred_check_branch
      %63 = sbr.rel (%p61) target = $region29
    $region28: #{tpu_custom_call.1} parent=1 // pred_region
      %64 = vst [vmem:[#allocation8] sm:$0xff] 0.0
      %65 = vst [vmem:[#allocation8 + $0x8] sm:$0xff] 0.0
      %66 = vst [vmem:[#allocation8 + $0x10] sm:$0xff] 0.0
      %67 = vst [vmem:[#allocation8 + $0x18] sm:$0xff] 0.0
    $region29: #{tpu_custom_call.1} parent=1 // pred_fallthru
      _
    %v68 = vld [vmem:[#allocation8] sm:$0xff]
    %v69 = vld [vmem:[#allocation8 + $0x8] sm:$0xff]
    %v70 = vld [vmem:[#allocation8 + $0x10] sm:$0xff]
    %v71 = vld [vmem:[#allocation8 + $0x18] sm:$0xff]
    %v72 = vld [vmem:[#allocation2] sm:$0xff]
    %v73 = vld [vmem:[#allocation2 + $0x8] sm:$0xff]
    %v74 = vld [vmem:[#allocation5] sm:$0xff]
    %v75 = vld [vmem:[#allocation5 + $0x8] sm:$0xff]
    %v76 = vld [vmem:[#allocation5 + $0x10] sm:$0xff]
    %v77 = vld [vmem:[#allocation5 + $0x18] sm:$0xff]
    %v78 = vld [vmem:[#allocation5 + $0x20] sm:$0xff]
    %v79 = vld [vmem:[#allocation5 + $0x28] sm:$0xff]
    %v80 = vld [vmem:[#allocation5 + $0x30] sm:$0xff]
    %v81 = vld [vmem:[#allocation5 + $0x38] sm:$0xff]
    %v82 = vld [vmem:[#allocation5 + $0x40] sm:$0xff]
    %v83 = vld [vmem:[#allocation5 + $0x48] sm:$0xff]
    %v84 = vld [vmem:[#allocation5 + $0x50] sm:$0xff]
    %v85 = vld [vmem:[#allocation5 + $0x58] sm:$0xff]
    %v86 = vld [vmem:[#allocation5 + $0x60] sm:$0xff]
    %v87 = vld [vmem:[#allocation5 + $0x68] sm:$0xff]
    %v88 = vld [vmem:[#allocation5 + $0x70] sm:$0xff]
    %v89 = vld [vmem:[#allocation5 + $0x78] sm:$0xff]
    %v90 = vld [vmem:[#allocation5 + $0x80] sm:$0xff]
    %v91 = vld [vmem:[#allocation5 + $0x88] sm:$0xff]
    %v92 = vld [vmem:[#allocation5 + $0x90] sm:$0xff]
    %v93 = vld [vmem:[#allocation5 + $0x98] sm:$0xff]
    %v94 = vld [vmem:[#allocation5 + $0xa0] sm:$0xff]
    %v95 = vld [vmem:[#allocation5 + $0xa8] sm:$0xff]
    %v96 = vld [vmem:[#allocation5 + $0xb0] sm:$0xff]
    %v97 = vld [vmem:[#allocation5 + $0xb8] sm:$0xff]
    %v98 = vld [vmem:[#allocation5 + $0xc0] sm:$0xff]
    %v99 = vld [vmem:[#allocation5 + $0xc8] sm:$0xff]
    %v100 = vld [vmem:[#allocation5 + $0xd0] sm:$0xff]
    %v101 = vld [vmem:[#allocation5 + $0xd8] sm:$0xff]
    %v102 = vld [vmem:[#allocation5 + $0xe0] sm:$0xff]
    %v103 = vld [vmem:[#allocation5 + $0xe8] sm:$0xff]
    %v104 = vld [vmem:[#allocation5 + $0xf0] sm:$0xff]
    %v105 = vld [vmem:[#allocation5 + $0xf8] sm:$0xff]
    %106 = vmatpush.msra.mxu0 %v104
    %107 = vmatpush.msra.mxu0 %v102
    %108 = vmatpush.msra.mxu0 %v100
    %109 = vmatpush.msra.mxu0 %v98
    %110 = vmatpush.msra.mxu0 %v96
    %111 = vmatpush.msra.mxu0 %v94
    %112 = vmatpush.msra.mxu0 %v92
    %113 = vmatpush.msra.mxu0 %v90
    %114 = vmatpush.msra.mxu0 %v88
    %115 = vmatpush.msra.mxu0 %v86
    %116 = vmatpush.msra.mxu0 %v84
    %117 = vmatpush.msra.mxu0 %v82
    %118 = vmatpush.msra.mxu0 %v80
    %119 = vmatpush.msra.mxu0 %v78
    %120 = vmatpush.msra.mxu0 %v76
    %121 = vmatpush.msra.mxu0 %v74
    %122 = vmatmul.f32.gmra.mxu0 %v72
    %v123 = vpop.f32.mrf.mxu0
    %v124 = vadd.f32 0.0, %v123
    %125 = vmatmul.f32.gmra.mxu0 %v73
    %v126 = vpop.f32.mrf.mxu0
    %v127 = vadd.f32 0.0, %v126
    %128 = vdwg.mxu0
    %129 = vmatpush.msra.mxu0 %v105
    %130 = vmatpush.msra.mxu0 %v103
    %131 = vmatpush.msra.mxu0 %v101
    %132 = vmatpush.msra.mxu0 %v99
    %133 = vmatpush.msra.mxu0 %v97
    %134 = vmatpush.msra.mxu0 %v95
    %135 = vmatpush.msra.mxu0 %v93
    %136 = vmatpush.msra.mxu0 %v91
    %137 = vmatpush.msra.mxu0 %v89
    %138 = vmatpush.msra.mxu0 %v87
    %139 = vmatpush.msra.mxu0 %v85
    %140 = vmatpush.msra.mxu0 %v83
    %141 = vmatpush.msra.mxu0 %v81
    %142 = vmatpush.msra.mxu0 %v79
    %143 = vmatpush.msra.mxu0 %v77
    %144 = vmatpush.msra.mxu0 %v75
    %145 = vmatmul.f32.gmra.mxu0 %v72
    %v146 = vpop.f32.mrf.mxu0
    %v147 = vadd.f32 0.0, %v146
    %148 = vmatmul.f32.gmra.mxu0 %v73
    %v149 = vpop.f32.mrf.mxu0
    %v150 = vadd.f32 0.0, %v149
    %151 = vdwg.mxu0
    %v152 = vadd.f32 %v68, %v124
    %v153 = vadd.f32 %v69, %v147
    %v154 = vadd.f32 %v70, %v127
    %v155 = vadd.f32 %v71, %v150
    %156 = vst [vmem:[#allocation8] sm:$0xff] %v152
    %157 = vst [vmem:[#allocation8 + $0x8] sm:$0xff] %v153
    %158 = vst [vmem:[#allocation8 + $0x10] sm:$0xff] %v154
    %159 = vst [vmem:[#allocation8 + $0x18] sm:$0xff] %v155
    // Predicated region
    $region30: #{tpu_custom_call.1} parent=1 // pred_check
      %p160 = pneg %p60
    $region31: #{tpu_custom_call.1} parent=1 // pred_check_branch
      %162 = sbr.rel (%p160) target = $region33
    $region32: #{tpu_custom_call.1} parent=1 // pred_region
      %v163 = vld [vmem:[#allocation8] sm:$0xff]
      %v164 = vld [vmem:[#allocation8 + $0x8] sm:$0xff]
      %v165 = vld [vmem:[#allocation8 + $0x10] sm:$0xff]
      %v166 = vld [vmem:[#allocation8 + $0x18] sm:$0xff]
      %v167 = vld [vmem:[#allocation7] sm:$0x3]
      %v169 = vperm.slane %v167, 0
      %v170 = vperm.slane %v167, 1
      %v173 = vadd.f32 %v163, %v169
      %v174 = vadd.f32 %v164, %v170
      %v175 = vadd.f32 %v165, %v169
      %v176 = vadd.f32 %v166, %v170
      %177 = vst [vmem:[#allocation8] sm:$0xff] %v173
      %178 = vst [vmem:[#allocation8 + $0x8] sm:$0xff] %v174
      %179 = vst [vmem:[#allocation8 + $0x10] sm:$0xff] %v175
      %180 = vst [vmem:[#allocation8 + $0x18] sm:$0xff] %v176
    $region33: #{tpu_custom_call.1} parent=1 // pred_fallthru
      _
    // Predicated region
    $region34: #{tpu_custom_call.1} parent=1 // pred_check
      _
    $region35: #{tpu_custom_call.1} parent=1 // pred_check_branch
      %182 = sbr.rel (0) target = $region37
    $region36: #{tpu_custom_call.1} parent=1 // pred_region
      %184 = vsyncadd [#allocation4], 0
      %s185 = sshll.u32 [#allocation8], 4
      %s186 = int_to_ptr.vmem [resolvable:$true] %s185
      %s187 = sshll.u32 %s3, 4
      %s188 = int_to_ptr.hbm [resolvable:$true] %s187
      %193 = dma.vmem_to_hbm [thread:$0]  %s186, 512, %s188, [#allocation4], 256, 256, 16
    $region37: #{tpu_custom_call.1} parent=1 // pred_fallthru
      _
    // Predicated region
    $region38: #{tpu_custom_call.1} parent=1 // pred_check
      _
    $region39: #{tpu_custom_call.1} parent=1 // pred_check_branch
      %195 = sbr.rel (0) target = $region41
    $region40: #{tpu_custom_call.1} parent=1 // pred_region
      %197 = dma.done [#allocation4], 512
    $region41: #{tpu_custom_call.1} parent=1 // pred_fallthru
      _
    %198 = vsyncpa [#allocation3], 1
    %199 = vsyncpa [#allocation6], 1
    %200 = vsyncpa [#allocation4], 1

</llo_original>
